<compile_context>
chip_gen: v7x
topology: tpu7x:2x2x1
jax: 0.10.0
libtpu: 0.0.40
codegen_flags: <defaults>
</compile_context>

<pallas_src>
import jax
import jax.numpy as jnp
from jax import lax
from jax.experimental import pallas as pl
from jax.experimental.pallas import tpu as pltpu


def _cgm_kernel(feat_ref, map_ref, gamma_ref, out_ref):
    # feat_ref : (1, TC, HWp)  current feature tile (native dtype)
    # map_ref  : (1, K, HWp)   current batch's class maps (resident across C)
    # gamma_ref: (1, K)        per-class gamma
    # out_ref  : (1, TC, HWp)
    f = feat_ref[0]                               # (TC, HWp) native dtype
    m = map_ref[0]                                # (K,  HWp) native dtype
    g = gamma_ref[...].astype(jnp.float32)        # (1, K)

    # attn[c, k] = sum_hw f[c, hw] * m[k, hw]  -- contract shared last dim,
    # no transpose materialization, f32 MXU accumulation.
    attn = lax.dot_general(
        f, m,
        dimension_numbers=(((1,), (1,)), ((), ())),
        preferred_element_type=jnp.float32,
    )                                             # (TC, K) f32

    # scale[c] = 1 + sum_k gamma[k] * sigmoid(attn[c, k])
    scale = 1.0 + jnp.sum(jax.nn.sigmoid(attn) * g, axis=-1, keepdims=True)  # (TC, 1)

    # Rescale in the feature's native dtype (keeps bf16 paths bf16 on v6e/v7x).
    out_ref[0] = (f * scale.astype(f.dtype)).astype(out_ref.dtype)


def _tpu_vmem_capacity_bytes():
    try:
        return int(pltpu.get_tpu_info().vmem_capacity_bytes)
    except Exception:
        return 64 * 1024 * 1024  # conservative fallback (v7x per-core VMEM)


def _choose_c_tile(C, HW_pad, K, itemsize, budget_bytes):
    """Largest C tile whose double-buffered working set fits the budget."""

    def working_set(tc):
        # 2 buffers each for the feature-in and output blocks, plus the
        # double-buffered (K, HW) map block that stays resident across C.
        return (2 * 2 * tc + 2 * K) * HW_pad * itemsize

    if working_set(C) <= budget_bytes:
        return C  # whole-C block fits: fewest grid steps
    for tc in (1024, 512, 256, 128, 64, 32, 16, 8):
        if tc < C and working_set(tc) <= budget_bytes:
            return tc
    return 8


def cgm_forward(feature, seg_map, gamma):
    """feature: (B, C, H, W), seg_map: (B, K, H, W), gamma: (K,) -> (B, C, H, W)."""
    B, C, H, W = feature.shape
    K = seg_map.shape[1]
    HW = H * W
    HW_pad = ((HW + 127) // 128) * 128
    itemsize = jnp.dtype(feature.dtype).itemsize

    feat_flat = feature.reshape(B, C, HW)
    map_flat = seg_map.reshape(B, K, HW)
    if HW_pad != HW:
        # Zero padding is exact: padded columns contribute 0 to the HW sum and
        # the padded output columns are sliced away afterwards.
        pad = HW_pad - HW
        feat_flat = jnp.pad(feat_flat, ((0, 0), (0, 0), (0, pad)))
        map_flat = jnp.pad(map_flat, ((0, 0), (0, 0), (0, pad)))
    gamma2d = gamma.reshape(1, K)

    vmem_cap = _tpu_vmem_capacity_bytes()
    budget = vmem_cap // 2                      # leave half of VMEM as headroom
    TC = _choose_c_tile(C, HW_pad, K, itemsize, budget)
    num_c_tiles = pl.cdiv(C, TC)
    # If C % TC != 0 the last block reads (unspecified) out-of-range rows, but
    # each output row depends only on its own feature row and out-of-range
    # output rows are masked on store, so correctness is unaffected.

    vmem_limit = max(32 * 1024 * 1024,
                     min((vmem_cap * 3) // 4, budget + (8 << 20)))

    cost = pl.CostEstimate(
        flops=2 * B * C * K * HW_pad + 2 * B * C * HW_pad,
        transcendentals=B * C * K,
        bytes_accessed=B * (2 * C + K) * HW_pad * itemsize,
    )

    out_flat = pl.pallas_call(
        _cgm_kernel,
        out_shape=jax.ShapeDtypeStruct((B, C, HW_pad), feature.dtype),
        grid_spec=pltpu.PrefetchScalarGridSpec(
            num_scalar_prefetch=0,
            grid=(B, num_c_tiles),              # C-tile axis innermost
            in_specs=[
                pl.BlockSpec((1, TC, HW_pad), lambda b, c: (b, c, 0)),
                pl.BlockSpec((1, K, HW_pad), lambda b, c: (b, 0, 0)),  # resident over C
                pl.BlockSpec((1, K), lambda b, c: (0, 0)),
            ],
            out_specs=pl.BlockSpec((1, TC, HW_pad), lambda b, c: (b, c, 0)),
        ),
        compiler_params=pltpu.CompilerParams(
            dimension_semantics=("parallel", "parallel"),
            vmem_limit_bytes=int(vmem_limit),
        ),
        cost_estimate=cost,
    )(feat_flat, map_flat, gamma2d)

    if HW_pad != HW:
        out_flat = out_flat[:, :, :HW]
    return out_flat.reshape(B, C, H, W)


def cgm_reference(feature, seg_map, gamma):
    """Pure-JAX reference mirroring the PyTorch module."""
    B, C, H, W = feature.shape
    K = seg_map.shape[1]
    f = feature.reshape(B, C, H * W)
    m = seg_map.reshape(B, K, H * W)
    attn = jnp.einsum("bcs,bks->bck", f, m)                          # (B, C, K)
    scale = 1.0 + jnp.sum(jax.nn.sigmoid(attn) * gamma.reshape(1, 1, K), axis=-1)
    return feature * scale[:, :, None, None]


if __name__ == "__main__":
    B, C, H, W = 2, 4, 16, 16
    num_classes = 4

    key = jax.random.PRNGKey(0)
    k1, k2, k3 = jax.random.split(key, 3)
    feature = jax.random.normal(k1, (B, C, H, W), dtype=jnp.float32)
    seg_map = jax.random.normal(k2, (B, num_classes, H, W), dtype=jnp.float32)
    # nn.Parameter(torch.zeros(...)) init would make this an identity; use a
    # small deterministic nonzero gamma to exercise the full path.
    gamma = 0.1 * jax.random.normal(k3, (num_classes,), dtype=jnp.float32)

    out = cgm_forward(feature, seg_map, gamma)
    out = jax.block_until_ready(out)

    ref = cgm_reference(feature, seg_map, gamma)
    assert out.shape == (B, C, H, W)
    assert jnp.allclose(out, ref, atol=1e-4, rtol=1e-4)

    print("KERNEL_OK")
</pallas_src>

<mosaic_0001>
module attributes {stable_mosaic.version = 11 : i64} {
  func.func @_cgm_kernel(%arg0: i32, %arg1: i32, %arg2: memref<1x4x256xf32, #tpu.memory_space<vmem>>, %arg3: memref<1x4x256xf32, #tpu.memory_space<vmem>>, %arg4: memref<1x4xf32, #tpu.memory_space<vmem>>, %arg5: memref<1x4x256xf32, #tpu.memory_space<vmem>>) attributes {dimension_semantics = [#tpu.dimension_semantics<parallel>, #tpu.dimension_semantics<parallel>], iteration_bounds = array<i64: 2, 1>, scalar_prefetch = 0 : i64, scratch_operands = 0 : i64, tpu.core_type = #tpu.core_type<tc>, window_params = [{transform_indices = @transform_0, window_bounds = array<i64: 1, 4, 256>}, {transform_indices = @transform_1, window_bounds = array<i64: 1, 4, 256>}, {pipeline_mode = #tpu.pipeline_mode<synchronous>, transform_indices = @transform_2, window_bounds = array<i64: 1, 4>}, {transform_indices = @transform_3, window_bounds = array<i64: 1, 4, 256>}]} {
    %c0 = arith.constant 0 : index
    %c0_0 = arith.constant 0 : index
    %c0_1 = arith.constant 0 : index
    %0 = vector.load %arg2[%c0, %c0_0, %c0_1] : memref<1x4x256xf32, #tpu.memory_space<vmem>>, vector<1x4x256xf32>
    %1 = vector.shape_cast %0 : vector<1x4x256xf32> to vector<4x256xf32>
    %c0_2 = arith.constant 0 : index
    %c0_3 = arith.constant 0 : index
    %c0_4 = arith.constant 0 : index
    %2 = vector.load %arg3[%c0_2, %c0_3, %c0_4] : memref<1x4x256xf32, #tpu.memory_space<vmem>>, vector<1x4x256xf32>
    %3 = vector.shape_cast %2 : vector<1x4x256xf32> to vector<4x256xf32>
    %c0_5 = arith.constant 0 : index
    %c0_6 = arith.constant 0 : index
    %4 = vector.load %arg4[%c0_5, %c0_6] : memref<1x4xf32, #tpu.memory_space<vmem>>, vector<1x4xf32>
    %cst = arith.constant dense<0.000000e+00> : vector<4x4xf32>
    %5 = tpu.matmul %1, %3, %cst {dimension_numbers = #tpu.dot_dimension_numbers<[1], [1], [0], [0], [0, 0, 1, 0], [], []>} : vector<4x256xf32>, vector<4x256xf32>, vector<4x4xf32> -> vector<4x4xf32>
    %6 = arith.negf %5 : vector<4x4xf32>
    %7 = math.exp %6 : vector<4x4xf32>
    %cst_7 = arith.constant 1.000000e+00 : f32
    %8 = vector.broadcast %cst_7 : f32 to vector<4x4xf32>
    %9 = arith.addf %8, %7 : vector<4x4xf32>
    %10 = arith.divf %8, %9 : vector<4x4xf32>
    %11 = vector.broadcast %4 : vector<1x4xf32> to vector<4x4xf32>
    %12 = arith.mulf %10, %11 : vector<4x4xf32>
    %cst_8 = arith.constant dense<0.000000e+00> : vector<4xf32>
    %13 = vector.multi_reduction <add>, %12, %cst_8 [1] : vector<4x4xf32> to vector<4xf32>
    %14 = vector.shape_cast %13 : vector<4xf32> to vector<4x1xf32>
    %cst_9 = arith.constant 1.000000e+00 : f32
    %15 = vector.broadcast %cst_9 : f32 to vector<4x1xf32>
    %16 = arith.addf %15, %14 : vector<4x1xf32>
    %17 = vector.broadcast %16 : vector<4x1xf32> to vector<4x256xf32>
    %18 = arith.mulf %1, %17 : vector<4x256xf32>
    %c0_10 = arith.constant 0 : index
    %c0_11 = arith.constant 0 : index
    %c0_12 = arith.constant 0 : index
    %19 = vector.load %arg5[%c0_10, %c0_11, %c0_12] : memref<1x4x256xf32, #tpu.memory_space<vmem>>, vector<1x4x256xf32>
    %20 = vector.shape_cast %19 : vector<1x4x256xf32> to vector<4x256xf32>
    %21 = vector.shape_cast %18 : vector<4x256xf32> to vector<1x4x256xf32>
    tpu.vector_store %arg5[%c0_10, %c0_11, %c0_12], %21 {strides = array<i32>} : memref<1x4x256xf32, #tpu.memory_space<vmem>>, vector<1x4x256xf32>,
    return
  }
  func.func @transform_0(%arg0: i32, %arg1: i32) -> (i32, i32, i32) {
    %c0_i32 = arith.constant 0 : i32
    %c0_i32_0 = arith.constant 0 : i32
    return %arg0, %arg1, %c0_i32 : i32, i32, i32
  }
  func.func @transform_1(%arg0: i32, %arg1: i32) -> (i32, i32, i32) {
    %c0_i32 = arith.constant 0 : i32
    %c0_i32_0 = arith.constant 0 : i32
    %c0_i32_1 = arith.constant 0 : i32
    return %arg0, %c0_i32, %c0_i32_0 : i32, i32, i32
  }
  func.func @transform_2(%arg0: i32, %arg1: i32) -> (i32, i32) {
    %c0_i32 = arith.constant 0 : i32
    %c0_i32_0 = arith.constant 0 : i32
    %c0_i32_1 = arith.constant 0 : i32
    return %c0_i32, %c0_i32_0 : i32, i32
  }
  func.func @transform_3(%arg0: i32, %arg1: i32) -> (i32, i32, i32) {
    %c0_i32 = arith.constant 0 : i32
    %c0_i32_0 = arith.constant 0 : i32
    return %arg0, %arg1, %c0_i32 : i32, i32, i32
  }
}

</mosaic_0001>

<llo_original>
// kernel: tpu_custom_call.1
$region0: #{tpu_custom_call.1}
  #allocation0 [shape = 'u32[]', space=smem, size = 0x4, offset = 0x4, fixed_abs, tag = 'smem constant byte address 0x4 - core index']
  #allocation1 [shape = 'u32[144,128]{1,0:T(1,128)}', space=vmem, size = 0x12000, scoped, tag = 'internal scratch']
  %s0 = inlined_call_operand.hbm [shape: f32[2,4,256], index: 0, kind: input, shape index: {}]
  %s1 = inlined_call_operand.hbm [shape: f32[2,4,256], index: 1, kind: input, shape index: {}]
  %s2 = inlined_call_operand.vmem [shape: f32[1,4], index: 2, kind: input, shape index: {}]
  %s3 = inlined_call_operand.hbm [shape: f32[2,4,256], index: 3, kind: output, shape index: {}]
  %s4 = sld [smem:[#allocation0]]
  $region53: #{tpu_custom_call.1} parent=0
    _
  %s6 = ssub.s32 1, %s4
  %s7 = scalar_select 0, %s6, %s4
  $region1: #{tpu_custom_call.1} parent=0
    #allocation2 [shape = 'u8[8192]{0}', space=vmem, size = 0x2000, scoped, tag = 'input window, operand 0']
    #allocation3 [shape = 's32[2]{0}', space=sflag, size = 0x8, scoped, tag = 'scoped memory for tpu_custom_call.1']
    #allocation4 [shape = 's32[2]{0}', space=sflag, size = 0x8, scoped, tag = 'scoped memory for tpu_custom_call.1']
    #allocation5 [shape = 'u8[8192]{0}', space=vmem, size = 0x2000, scoped, tag = 'input window, operand 1']
    #allocation6 [shape = 's32[2]{0}', space=sflag, size = 0x8, scoped, tag = 'scoped memory for tpu_custom_call.1']
    #allocation7 [shape = 'u8[8192]{0}', space=vmem, size = 0x2000, scoped, tag = 'output window, operand 0']
    %8 = vsyncpa [#allocation3], 0
    %s9 = scalar_lea.sflag [#allocation3], 1
    %10 = vsyncpa %s9, 0
    %11 = vsyncpa [#allocation6], 0
    %s12 = scalar_lea.sflag [#allocation6], 1
    %13 = vsyncpa %s12, 0
    %14 = vsyncpa [#allocation4], 0
    %s15 = scalar_lea.sflag [#allocation4], 1
    %16 = vsyncpa %s15, 0
    loop: start=0, step=1, limit=4
    $region2: #{tpu_custom_call.1} parent=1 // loop_pre_header
      _
    $region3: #{tpu_custom_call.1} parent=1 // loop_header
      %s18 = sphi 0, %s22
      %p19 = scmp.ge.s32.totalorder %s18, 4
      %s25 = sphi 0, %s37
      %s26 = sphi 0, %s33
      %s27 = sphi 0, %s25
      %s28 = sphi 0, %s26
      %s29 = sphi 0, %s27
      %s30 = sphi 0, %s28
      %s42 = sphi 0, %s44
      %s45 = sphi 0, %s42
      %s46 = sphi 0, %s45
      %s62 = sphi 0, %s46
      %s68 = sphi 0, %s70
      %s71 = sphi 0, %s68
      %s72 = sphi 0, %s71
      %s88 = sphi 0, %s72
      %s92 = sphi 0, %s92
      %s94 = sphi 0, %s92
      %s95 = sphi 0, %s94
      %s109 = sphi 0, %s95
      %s117 = sphi 0, %s119
      %s120 = sphi 0, %s117
      %s121 = sphi 0, %s120
      %s137 = sphi 0, %s121
    $region4: #{tpu_custom_call.1} parent=1 // loop_header_branch
      %21 = sbr.rel (%p19) target = $region8
    $region5: #{tpu_custom_call.1} parent=1 // loop_body
      %s23 = ssub.s32 %s18, 1
      %s24 = ssub.s32 %s18, 2
      %s31 = sadd.s32 1, %s26
      %p32 = scmp.ge.s32.totalorder %s31, 1
      %s33 = scalar_select %p32, 0, %s31
      %s34 = sadd.s32 1, %s25
      %s35 = scalar_select %p32, %s34, %s25
      %p36 = scmp.ge.s32.totalorder %s35, 2
      %s37 = scalar_select %p36, 0, %s35
      %s38 = ssub.s32 %s25, %s37
      %s39 = ssub.s32 %s26, %s33
      %s40 = sor.u32 %s38, %s39
      %p41 = scmp.eq.s32.totalorder %s40, 0
      %s43 = sadd.s32 %s42, 1
      %s44 = scalar_select %p41, %s42, %s43
      %p47 = pneg %p41
      %p48 = scmp.eq.s32.totalorder %s18, 1
      %p49 = por %p47, %p48
      %p50 = scmp.ne.s32.totalorder %s42, %s45
      %p51 = scmp.eq.s32.totalorder %s18, 0
      %p52 = por %p50, %p51
      %p53 = scmp.ne.s32.totalorder %s42, %s45
      %p54 = scmp.eq.s32.totalorder %s23, 1
      %p55 = por %p53, %p54
      %p56 = scmp.ne.s32.totalorder %s45, %s46
      %p57 = scmp.eq.s32.totalorder %s23, 0
      %p58 = por %p56, %p57
      %p59 = scmp.ne.s32.totalorder %s45, %s46
      %p60 = scmp.eq.s32.totalorder %s24, 1
      %p61 = por %p59, %p60
      %p63 = scmp.ne.s32.totalorder %s46, %s62
      %p64 = scmp.eq.s32.totalorder %s24, 0
      %p65 = por %p63, %p64
      %s66 = ssub.s32 %s25, %s37
      %p67 = scmp.eq.s32.totalorder %s66, 0
      %s69 = sadd.s32 %s68, 1
      %s70 = scalar_select %p67, %s68, %s69
      %p73 = pneg %p67
      %p74 = scmp.eq.s32.totalorder %s18, 1
      %p75 = por %p73, %p74
      %p76 = scmp.ne.s32.totalorder %s68, %s71
      %p77 = scmp.eq.s32.totalorder %s18, 0
      %p78 = por %p76, %p77
      %p79 = scmp.ne.s32.totalorder %s68, %s71
      %p80 = scmp.eq.s32.totalorder %s23, 1
      %p81 = por %p79, %p80
      %p82 = scmp.ne.s32.totalorder %s71, %s72
      %p83 = scmp.eq.s32.totalorder %s23, 0
      %p84 = por %p82, %p83
      %p85 = scmp.ne.s32.totalorder %s71, %s72
      %p86 = scmp.eq.s32.totalorder %s24, 1
      %p87 = por %p85, %p86
      %p89 = scmp.ne.s32.totalorder %s72, %s88
      %p90 = scmp.eq.s32.totalorder %s24, 0
      %p91 = por %p89, %p90
      %s93 = sadd.s32 %s92, 1
      %p96 = scmp.eq.s32.totalorder %s18, 1
      %p97 = scmp.ne.s32.totalorder %s92, %s94
      %p98 = scmp.eq.s32.totalorder %s18, 0
      %p99 = por %p97, %p98
      %p100 = scmp.ne.s32.totalorder %s92, %s94
      %p101 = scmp.eq.s32.totalorder %s23, 1
      %p102 = por %p100, %p101
      %p103 = scmp.ne.s32.totalorder %s94, %s95
      %p104 = scmp.eq.s32.totalorder %s23, 0
      %p105 = por %p103, %p104
      %p106 = scmp.ne.s32.totalorder %s94, %s95
      %p107 = scmp.eq.s32.totalorder %s24, 1
      %p108 = por %p106, %p107
      %p110 = scmp.ne.s32.totalorder %s95, %s109
      %p111 = scmp.eq.s32.totalorder %s24, 0
      %p112 = por %p110, %p111
      %s113 = ssub.s32 %s25, %s37
      %s114 = ssub.s32 %s26, %s33
      %s115 = sor.u32 %s113, %s114
      %p116 = scmp.eq.s32.totalorder %s115, 0
      %s118 = sadd.s32 %s117, 1
      %s119 = scalar_select %p116, %s117, %s118
      %p122 = pneg %p116
      %p123 = scmp.eq.s32.totalorder %s18, 1
      %p124 = por %p122, %p123
      %p125 = scmp.ne.s32.totalorder %s117, %s120
      %p126 = scmp.eq.s32.totalorder %s18, 0
      %p127 = por %p125, %p126
      %p128 = scmp.ne.s32.totalorder %s117, %s120
      %p129 = scmp.eq.s32.totalorder %s23, 1
      %p130 = por %p128, %p129
      %p131 = scmp.ne.s32.totalorder %s120, %s121
      %p132 = scmp.eq.s32.totalorder %s23, 0
      %p133 = por %p131, %p132
      %p134 = scmp.ne.s32.totalorder %s120, %s121
      %p135 = scmp.eq.s32.totalorder %s24, 1
      %p136 = por %p134, %p135
      %p138 = scmp.ne.s32.totalorder %s121, %s137
      %p139 = scmp.eq.s32.totalorder %s24, 0
      %p140 = por %p138, %p139
      %p141 = scmp.le.s32.totalorder 1, %s18
      %p142 = scmp.lt.s32.totalorder %s18, 3
      %p143 = pnand %p141, %p142
      %p144 = pneg %p143
      // Predicated region
      $region9: #{tpu_custom_call.1} parent=5 // pred_check
        _
      $region10: #{tpu_custom_call.1} parent=5 // pred_check_branch
        %146 = sbr.rel (%p143) target = $region12
      $region11: #{tpu_custom_call.1} parent=5 // pred_region
        %s147 = ssub.s32 %s18, 1
        // Predicated region
        $region13: #{tpu_custom_call.1} parent=11 // pred_check
          %p148 = pneg %p105
        $region14: #{tpu_custom_call.1} parent=11 // pred_check_branch
          %150 = sbr.rel (%p148) target = $region16
        $region15: #{tpu_custom_call.1} parent=11 // pred_region
          _
        $region16: #{tpu_custom_call.1} parent=11 // pred_fallthru
          _
      $region12: #{tpu_custom_call.1} parent=5 // pred_fallthru
        _
      %p151 = scmp.lt.s32.totalorder %s18, 2
      // Predicated region
      $region17: #{tpu_custom_call.1} parent=5 // pred_check
        %p152 = pneg %p151
      $region18: #{tpu_custom_call.1} parent=5 // pred_check_branch
        %154 = sbr.rel (%p152) target = $region20
      $region19: #{tpu_custom_call.1} parent=5 // pred_region
        // Predicated region
        $region21: #{tpu_custom_call.1} parent=19 // pred_check
          %p155 = pneg %p52
        $region22: #{tpu_custom_call.1} parent=19 // pred_check_branch
          %157 = sbr.rel (%p155) target = $region24
        $region23: #{tpu_custom_call.1} parent=19 // pred_region
          %s158 = sand.u32 %s42, 1
          %s159 = scalar_lea.sflag [#allocation3], %s158
          %s160 = sand.u32 %s42, 1
          %s161 = smul.addr %s160, 8
          %s162 = scalar_lea.vmem [#allocation2], %s161
          %s164 = ssub.s32 128, 128
          %165 = vsyncadd %s159, %s164
          %s166 = smul.addr %s26, 2
          %s167 = smul.addr %s25, 2
          %s168 = sadd.s32 %s166, %s167
          %s169 = smul.addr %s168, 64
          %s170 = scalar_lea.hbm %s0, %s169
          %s172 = sshll.u32 %s162, 4
          %s173 = int_to_ptr.vmem [resolvable:$true] %s172
          %175 = dma.hbm_to_vmem [thread:$0]  %s170, 128, %s173, %s159
        $region24: #{tpu_custom_call.1} parent=19 // pred_fallthru
          _
        // Predicated region
        $region25: #{tpu_custom_call.1} parent=19 // pred_check
          %p176 = pneg %p78
        $region26: #{tpu_custom_call.1} parent=19 // pred_check_branch
          %178 = sbr.rel (%p176) target = $region28
        $region27: #{tpu_custom_call.1} parent=19 // pred_region
          %s179 = sand.u32 %s68, 1
          %s180 = scalar_lea.sflag [#allocation6], %s179
          %s181 = sand.u32 %s68, 1
          %s182 = smul.addr %s181, 8
          %s183 = scalar_lea.vmem [#allocation5], %s182
          %s185 = ssub.s32 128, 128
          %186 = vsyncadd %s180, %s185
          %s187 = smul.addr %s25, 2
          %s188 = smul.addr %s187, 64
          %s189 = scalar_lea.hbm %s1, %s188
          %s191 = sshll.u32 %s183, 4
          %s192 = int_to_ptr.vmem [resolvable:$true] %s191
          %194 = dma.hbm_to_vmem [thread:$0]  %s189, 128, %s192, %s180
        $region28: #{tpu_custom_call.1} parent=19 // pred_fallthru
          _
      $region20: #{tpu_custom_call.1} parent=5 // pred_fallthru
        _
      %p195 = scmp.le.s32.totalorder 1, %s18
      %p196 = scmp.lt.s32.totalorder %s18, 3
      %p197 = pnand %p195, %p196
      %p198 = pneg %p197
      // Predicated region
      $region29: #{tpu_custom_call.1} parent=5 // pred_check
        _
      $region30: #{tpu_custom_call.1} parent=5 // pred_check_branch
        %200 = sbr.rel (%p197) target = $region32
      $region31: #{tpu_custom_call.1} parent=5 // pred_region
        %s201 = ssub.s32 %s18, 1
        %s202 = sand.u32 %s45, 1
        %s203 = scalar_lea.sflag [#allocation3], %s202
        %s204 = sand.u32 %s45, 1
        %s205 = smul.addr %s204, 8
        %s206 = scalar_lea.vmem [#allocation2], %s205
        // Predicated region
        $region33: #{tpu_custom_call.1} parent=31 // pred_check
          %p207 = pneg %p58
        $region34: #{tpu_custom_call.1} parent=31 // pred_check_branch
          %209 = sbr.rel (%p207) target = $region36
        $region35: #{tpu_custom_call.1} parent=31 // pred_region
          %210 = dma.done %s203, 128
        $region36: #{tpu_custom_call.1} parent=31 // pred_fallthru
          _
        %s211 = sand.u32 %s71, 1
        %s212 = scalar_lea.sflag [#allocation6], %s211
        %s213 = sand.u32 %s71, 1
        %s214 = smul.addr %s213, 8
        %s215 = scalar_lea.vmem [#allocation5], %s214
        // Predicated region
        $region37: #{tpu_custom_call.1} parent=31 // pred_check
          %p216 = pneg %p84
        $region38: #{tpu_custom_call.1} parent=31 // pred_check_branch
          %218 = sbr.rel (%p216) target = $region40
        $region39: #{tpu_custom_call.1} parent=31 // pred_region
          %219 = dma.done %s212, 128
        $region40: #{tpu_custom_call.1} parent=31 // pred_fallthru
          _
        %s220 = sand.u32 %s45, 1
        %s221 = scalar_lea.sflag [#allocation3], %s220
        %s222 = sand.u32 %s45, 1
        %s223 = smul.addr %s222, 8
        %s224 = scalar_lea.vmem [#allocation2], %s223
        %p225 = pneg %p58
        %p226 = pneg %p55
        %s227 = sand.u32 %s71, 1
        %s228 = scalar_lea.sflag [#allocation6], %s227
        %s229 = sand.u32 %s71, 1
        %s230 = smul.addr %s229, 8
        %s231 = scalar_lea.vmem [#allocation5], %s230
        %p232 = pneg %p84
        %p233 = pneg %p81
        %p234 = pneg %p105
        %p235 = pneg %p102
        %p236 = pneg %p133
        %p237 = pneg %p130
        %s238 = sand.u32 %s120, 1
        %s239 = scalar_lea.sflag [#allocation4], %s238
        %s240 = sand.u32 %s120, 1
        %s241 = smul.addr %s240, 8
        %s242 = scalar_lea.vmem [#allocation7], %s241
        %v243 = vld [vmem:[%s206] sm:$0xff]
        %v244 = vld [vmem:[%s215] sm:$0xff]
        %v245 = vld [vmem:[%s2] sm:$0x1]
        %v247 = vcombine.high %v243, %v243
        %v250 = vcombine.high %v244, %v244
        %252 = vmatprep.subr.mxu0 %v250
        %253 = vmatpush1.xpose.msra.mxu0 %v244
        %254 = vmatprep.subr.mxu0 0.0
        %255 = vmatpush1.xpose.msra.mxu0 0.0
        %256 = vmatprep.subr.mxu0 0.0
        %257 = vmatpush1.xpose.msra.mxu0 0.0
        %258 = vmatprep.subr.mxu0 0.0
        %259 = vmatpush1.xpose.msra.mxu0 0.0
        %260 = vmatprep.subr.mxu0 0.0
        %261 = vmatpush1.xpose.msra.mxu0 0.0
        %262 = vmatprep.subr.mxu0 0.0
        %263 = vmatpush1.xpose.msra.mxu0 0.0
        %264 = vmatprep.subr.mxu0 0.0
        %265 = vmatpush1.xpose.msra.mxu0 0.0
        %266 = vmatprep.subr.mxu0 0.0
        %267 = vmatpush1.xpose.msra.mxu0 0.0
        %268 = vmatprep.subr.mxu0 0.0
        %269 = vmatpush1.xpose.msra.mxu0 0.0
        %270 = vmatprep.subr.mxu0 0.0
        %271 = vmatpush1.xpose.msra.mxu0 0.0
        %272 = vmatprep.subr.mxu0 0.0
        %273 = vmatpush1.xpose.msra.mxu0 0.0
        %274 = vmatprep.subr.mxu0 0.0
        %275 = vmatpush1.xpose.msra.mxu0 0.0
        %276 = vmatprep.subr.mxu0 0.0
        %277 = vmatpush1.xpose.msra.mxu0 0.0
        %278 = vmatprep.subr.mxu0 0.0
        %279 = vmatpush1.xpose.msra.mxu0 0.0
        %280 = vmatprep.subr.mxu0 0.0
        %281 = vmatpush1.xpose.msra.mxu0 0.0
        %282 = vmatprep.subr.mxu0 0.0
        %283 = vmatpush1.xpose.msra.mxu0 0.0
        %284 = vmatprep.subr.mxu0 0.0
        %285 = vmatpush1.xpose.msra.mxu0 0.0
        %286 = vmatprep.subr.mxu0 0.0
        %287 = vmatpush1.xpose.msra.mxu0 0.0
        %288 = vmatprep.subr.mxu0 0.0
        %289 = vmatpush1.xpose.msra.mxu0 0.0
        %290 = vmatprep.subr.mxu0 0.0
        %291 = vmatpush1.xpose.msra.mxu0 0.0
        %292 = vmatprep.subr.mxu0 0.0
        %293 = vmatpush1.xpose.msra.mxu0 0.0
        %294 = vmatprep.subr.mxu0 0.0
        %295 = vmatpush1.xpose.msra.mxu0 0.0
        %296 = vmatprep.subr.mxu0 0.0
        %297 = vmatpush1.xpose.msra.mxu0 0.0
        %298 = vmatprep.subr.mxu0 0.0
        %299 = vmatpush1.xpose.msra.mxu0 0.0
        %300 = vmatprep.subr.mxu0 0.0
        %301 = vmatpush1.xpose.msra.mxu0 0.0
        %302 = vmatprep.subr.mxu0 0.0
        %303 = vmatpush1.xpose.msra.mxu0 0.0
        %304 = vmatprep.subr.mxu0 0.0
        %305 = vmatpush1.xpose.msra.mxu0 0.0
        %306 = vmatprep.subr.mxu0 0.0
        %307 = vmatpush1.xpose.msra.mxu0 0.0
        %308 = vmatprep.subr.mxu0 0.0
        %309 = vmatpush1.xpose.msra.mxu0 0.0
        %310 = vmatprep.subr.mxu0 0.0
        %311 = vmatpush1.xpose.msra.mxu0 0.0
        %312 = vmatprep.subr.mxu0 0.0
        %313 = vmatpush1.xpose.msra.mxu0 0.0
        %314 = vmatprep.subr.mxu0 0.0
        %315 = vmatpush1.xpose.msra.mxu0 0.0
        %316 = vmatprep.mubr.f32.mxu0 %v247
        %317 = vmatmul.mubr.f32.gmra.mrb[0].mxu0 %v243
        %v318 = vpop.f32.mrb[0].mxu0
        %v319 = vadd.f32 0.0, %v318
        %v320 = vpop.f32.mrb[0].mxu0
        %321 = vdwg.mxu0
        %v322 = vxor.u32 %v319, 2147483648
        %v323 = vmul.f32 %v322, 1.442695
        %v324 = vpow.pop %v323
        %v325 = vadd.f32 %v324, 1.0
        %v326 = vrcp.pop %v325
        %v327 = vmul.f32 1.0, %v326
        %v329 = vlaneseq
        %v330 = vshrl.u32 %v329, 7
        %v331 = vsub.s32 0, %v330
        %v332 = vrot.slane %v245, %v331
        %v334 = vmul.f32 %v327, %v332
        %vm335 = vcmask 27648
        %v336 = vsel %vm335, %v334, 0.0
        %337 = vadd.xlane.f32.xlu0 %v336
        %v338 = vpop.xlane.xlu0 %337
        %v339 = vadd.f32 %v338, 1.0
        %v342 = vunpack.c.l.s4 839922192
        %v343 = vunpack.c.0.s8 %v342
        %v344 = vlaneseq
        %v345 = vshrl.u32 %v344, 7
        %v346 = vsub.s32 %v343, %v345
        %v347 = vrot.slane %v339, %v346
        %v349 = vmul.f32 %v243, %v347
        %350 = vst [vmem:[%s242] sm:$0xff] %v349
        %s351 = sand.u32 %s120, 1
        %s352 = scalar_lea.sflag [#allocation4], %s351
        %s353 = sand.u32 %s120, 1
        %s354 = smul.addr %s353, 8
        %s355 = scalar_lea.vmem [#allocation7], %s354
        // Predicated region
        $region41: #{tpu_custom_call.1} parent=31 // pred_check
          %p356 = pneg %p130
        $region42: #{tpu_custom_call.1} parent=31 // pred_check_branch
          %358 = sbr.rel (%p356) target = $region44
        $region43: #{tpu_custom_call.1} parent=31 // pred_region
          %s360 = ssub.s32 128, 128
          %361 = vsyncadd %s352, %s360
          %s362 = smul.addr %s28, 2
          %s363 = smul.addr %s27, 2
          %s364 = sadd.s32 %s362, %s363
          %s365 = smul.addr %s364, 64
          %s366 = scalar_lea.hbm %s3, %s365
          %s368 = sshll.u32 %s355, 4
          %s369 = int_to_ptr.vmem [resolvable:$true] %s368
          %371 = dma.vmem_to_hbm [thread:$0]  %s369, 128, %s366, %s352
        $region44: #{tpu_custom_call.1} parent=31 // pred_fallthru
          _
      $region32: #{tpu_custom_call.1} parent=5 // pred_fallthru
        _
      %p372 = scmp.le.s32.totalorder 2, %s18
      // Predicated region
      $region45: #{tpu_custom_call.1} parent=5 // pred_check
        %p373 = pneg %p372
      $region46: #{tpu_custom_call.1} parent=5 // pred_check_branch
        %375 = sbr.rel (%p373) target = $region48
      $region47: #{tpu_custom_call.1} parent=5 // pred_region
        %s376 = ssub.s32 %s18, 2
        // Predicated region
        $region49: #{tpu_custom_call.1} parent=47 // pred_check
          %p377 = pneg %p136
        $region50: #{tpu_custom_call.1} parent=47 // pred_check_branch
          %379 = sbr.rel (%p377) target = $region52
        $region51: #{tpu_custom_call.1} parent=47 // pred_region
          %s380 = sand.u32 %s121, 1
          %s381 = scalar_lea.sflag [#allocation4], %s380
          %s382 = sand.u32 %s121, 1
          %s383 = smul.addr %s382, 8
          %s384 = scalar_lea.vmem [#allocation7], %s383
          %385 = dma.done %s381, 128
        $region52: #{tpu_custom_call.1} parent=47 // pred_fallthru
          _
      $region48: #{tpu_custom_call.1} parent=5 // pred_fallthru
        _
    $region6: #{tpu_custom_call.1} parent=1 // loop_footer
      %s22 = sadd.s32 1, %s18
    $region7: #{tpu_custom_call.1} parent=1 // loop_footer_branch
      %17 = sbr.rel target = $region3
    $region8: #{tpu_custom_call.1} parent=1 // loop_exit
      _
    %386 = vsyncpa [#allocation3], 1
    %s387 = scalar_lea.sflag [#allocation3], 1
    %388 = vsyncpa %s387, 1
    %389 = vsyncpa [#allocation6], 1
    %s390 = scalar_lea.sflag [#allocation6], 1
    %391 = vsyncpa %s390, 1
    %392 = vsyncpa [#allocation4], 1
    %s393 = scalar_lea.sflag [#allocation4], 1
    %394 = vsyncpa %s393, 1

</llo_original>
